<compile_context>
chip_gen: v7x
topology: tpu7x:2x2x1
jax: 0.10.0
libtpu: 0.0.40
codegen_flags: <defaults>
</compile_context>

<pallas_src>
import functools

import jax
import jax.numpy as jnp
from jax.experimental import pallas as pl
from jax.experimental.pallas import tpu as pltpu


def _actor_kernel(max_action,
                  x_ref,
                  w1_ref, b1_ref,   # block-diag l1: [state_dim, 200], [1, 200]
                  w2_ref, b2_ref,   # block-diag l2: [200, 80],        [1, 80]
                  w3_ref, b3_ref,   # l3:            [80, 40],         [1, 40]
                  w4_ref, b4_ref,   # l4:            [40, 20],         [1, 20]
                  w5_ref, b5_ref,   # l5 (padded):   [20, 128],        [1, 128]
                  out_ref):
    x = x_ref[...]                                                   # [TB, S]

    # Shared l1/l2 over all 4 chunks as two block-diagonal matmuls; the
    # result of the second dot is already the concatenated [TB, 80] tensor.
    # Matmul operands follow the weight dtype (f32 or bf16); accumulation and
    # all elementwise work (bias, tanh, scale) are f32.
    h = jnp.tanh(jnp.dot(x, w1_ref[...],
                         preferred_element_type=jnp.float32) + b1_ref[...])
    h = jnp.tanh(jnp.dot(h.astype(w2_ref.dtype), w2_ref[...],
                         preferred_element_type=jnp.float32) + b2_ref[...])
    h = jnp.tanh(jnp.dot(h.astype(w3_ref.dtype), w3_ref[...],
                         preferred_element_type=jnp.float32) + b3_ref[...])
    h = jnp.tanh(jnp.dot(h.astype(w4_ref.dtype), w4_ref[...],
                         preferred_element_type=jnp.float32) + b4_ref[...])
    y = jnp.tanh(jnp.dot(h.astype(w5_ref.dtype), w5_ref[...],
                         preferred_element_type=jnp.float32) + b5_ref[...])
    out_ref[...] = max_action * y


def _round_up(v, m):
    return ((v + m - 1) // m) * m


def actor1_forward(x, params, max_action, *, batch_tile=4096, use_bf16=False):
    """x: [B, state_dim] float32. params: dict name -> (W [in,out], b [out])."""
    B, state_dim = x.shape
    assert state_dim % 4 == 0, "state_dim must be divisible by 4"
    chunk = state_dim // 4

    w1, b1 = params["l1"]
    w2, b2 = params["l2"]
    w3, b3 = params["l3"]
    w4, b4 = params["l4"]
    w5, b5 = params["l5"]
    assert w1.shape[0] == chunk
    action_dim = w5.shape[1]

    # Build block-diagonal shared-layer weights once, at trace time.
    w1_blk = jax.scipy.linalg.block_diag(w1, w1, w1, w1)   # [S, 200]
    b1_blk = jnp.tile(b1, 4).reshape(1, -1)                # [1, 200]
    w2_blk = jax.scipy.linalg.block_diag(w2, w2, w2, w2)   # [200, 80]
    b2_blk = jnp.tile(b2, 4).reshape(1, -1)                # [1, 80]

    # Lane-dense output: pad the final layer to a multiple of 128 output
    # columns so the writeback is an unmasked, full-lane store.
    out_pad = max(128, _round_up(action_dim, 128))
    w5_pad = jnp.zeros((w5.shape[0], out_pad), w5.dtype).at[:, :action_dim].set(w5)
    b5_pad = jnp.zeros((1, out_pad), b5.dtype).at[:, :action_dim].set(b5)

    mat_dtype = jnp.bfloat16 if use_bf16 else jnp.float32
    x_in = x.astype(mat_dtype)

    weights = [
        w1_blk.astype(mat_dtype), b1_blk,                  # biases stay f32
        w2_blk.astype(mat_dtype), b2_blk,
        w3.astype(mat_dtype), b3.reshape(1, -1),
        w4.astype(mat_dtype), b4.reshape(1, -1),
        w5_pad.astype(mat_dtype), b5_pad,
    ]

    # Batch tiling: big tiles amortize the per-step overhead, weights stay
    # resident (same block every grid step).  Guarantee >=2 grid steps when
    # the batch allows it so the "parallel" axis spans both TCs on v7x.
    if B <= 16:
        tb = B
    else:
        tb = min(batch_tile, _round_up(pl.cdiv(B, 2), 8))
    grid = (pl.cdiv(B, tb),)

    x_spec = pl.BlockSpec((tb, state_dim), lambda i: (i, 0))
    out_spec = pl.BlockSpec((tb, out_pad), lambda i: (i, 0))
    w_specs = [pl.BlockSpec(w.shape, lambda i: (0, 0)) for w in weights]

    flops = 2 * B * (state_dim * 200 + 200 * 80 + 80 * 40 + 40 * 20
                     + 20 * out_pad)
    transcendentals = B * (200 + 80 + 40 + 20 + out_pad)
    weight_bytes = sum(int(w.size) * w.dtype.itemsize for w in weights)
    bytes_accessed = (B * state_dim * x_in.dtype.itemsize
                      + B * out_pad * 4 + weight_bytes)
    cost = pl.CostEstimate(flops=flops,
                           transcendentals=transcendentals,
                           bytes_accessed=bytes_accessed)

    out_padded = pl.pallas_call(
        functools.partial(_actor_kernel, float(max_action)),
        out_shape=jax.ShapeDtypeStruct((B, out_pad), jnp.float32),
        grid=grid,
        in_specs=[x_spec] + w_specs,
        out_specs=out_spec,
        compiler_params=pltpu.CompilerParams(
            dimension_semantics=("parallel",),
            vmem_limit_bytes=48 * 1024 * 1024),
        cost_estimate=cost,
    )(x_in, *weights)

    return out_padded[:, :action_dim]


def _init_linear(key, fan_in, fan_out):
    # PyTorch nn.Linear default: U(-1/sqrt(fan_in), 1/sqrt(fan_in)) for W and b.
    kw, kb = jax.random.split(key)
    bound = 1.0 / jnp.sqrt(jnp.float32(fan_in))
    W = jax.random.uniform(kw, (fan_in, fan_out), jnp.float32, -bound, bound)
    b = jax.random.uniform(kb, (fan_out,), jnp.float32, -bound, bound)
    return W, b


def _reference(x, params, max_action):
    chunk = x.shape[1] // 4

    def lin(h, name):
        W, b = params[name]
        return h @ W + b

    hs = []
    for i in range(4):
        xi = x[:, i * chunk:(i + 1) * chunk]
        h = jnp.tanh(lin(xi, "l1"))
        h = jnp.tanh(lin(h, "l2"))
        hs.append(h)
    xf = jnp.concatenate(hs, axis=1)
    xf = jnp.tanh(lin(xf, "l3"))
    xf = jnp.tanh(lin(xf, "l4"))
    return max_action * jnp.tanh(lin(xf, "l5"))


if __name__ == "__main__":
    key = jax.random.PRNGKey(0)
    k_x, k_x2, k1, k2, k3, k4, k5 = jax.random.split(key, 7)

    state_dim = 16          # divisible by 4 -> each chunk is 4 features
    action_dim = 4
    max_action = 2.0

    params = {
        "l1": _init_linear(k1, state_dim // 4, 50),
        "l2": _init_linear(k2, 50, 20),
        "l3": _init_linear(k3, 80, 40),
        "l4": _init_linear(k4, 40, 20),
        "l5": _init_linear(k5, 20, action_dim),
    }

    # 1) Small batch, full-extent block, f32, tight tolerance.
    x = jax.random.normal(k_x, (2, state_dim), jnp.float32)
    out = jax.block_until_ready(actor1_forward(x, params, max_action))
    ref = _reference(x, params, max_action)
    assert out.shape == (2, action_dim)
    assert jnp.allclose(out, ref, atol=1e-5, rtol=1e-5), "f32 small mismatch"

    # 2) Larger batch exercising the >=2-step tiled grid (partial last tile),
    #    f32, tight tolerance.
    x2 = jax.random.normal(k_x2, (40, state_dim), jnp.float32)
    out2 = jax.block_until_ready(actor1_forward(x2, params, max_action))
    ref2 = _reference(x2, params, max_action)
    assert out2.shape == (40, action_dim)
    assert jnp.allclose(out2, ref2, atol=1e-5, rtol=1e-5), "f32 tiled mismatch"

    # 3) bf16 matmul-operand path (f32 accumulation/elementwise), loose tol.
    out_bf16 = jax.block_until_ready(
        actor1_forward(x2, params, max_action, use_bf16=True))
    assert jnp.allclose(out_bf16, ref2, atol=3e-2, rtol=3e-2), "bf16 mismatch"

    print("KERNEL_OK")
</pallas_src>

<mosaic_0001>
module attributes {stable_mosaic.version = 11 : i64} {
  func.func @_actor_kernel(%arg0: i32, %arg1: memref<2x16xf32, #tpu.memory_space<vmem>>, %arg2: memref<16x200xf32, #tpu.memory_space<vmem>>, %arg3: memref<1x200xf32, #tpu.memory_space<vmem>>, %arg4: memref<200x80xf32, #tpu.memory_space<vmem>>, %arg5: memref<1x80xf32, #tpu.memory_space<vmem>>, %arg6: memref<80x40xf32, #tpu.memory_space<vmem>>, %arg7: memref<1x40xf32, #tpu.memory_space<vmem>>, %arg8: memref<40x20xf32, #tpu.memory_space<vmem>>, %arg9: memref<1x20xf32, #tpu.memory_space<vmem>>, %arg10: memref<20x128xf32, #tpu.memory_space<vmem>>, %arg11: memref<1x128xf32, #tpu.memory_space<vmem>>, %arg12: memref<2x128xf32, #tpu.memory_space<vmem>>) attributes {dimension_semantics = [#tpu.dimension_semantics<parallel>], iteration_bounds = array<i64: 1>, scalar_prefetch = 0 : i64, scratch_operands = 0 : i64, tpu.core_type = #tpu.core_type<tc>, window_params = [{transform_indices = @transform_0, window_bounds = array<i64: 2, 16>}, {pipeline_mode = #tpu.pipeline_mode<synchronous>, transform_indices = @transform_1, window_bounds = array<i64: 16, 200>}, {pipeline_mode = #tpu.pipeline_mode<synchronous>, transform_indices = @transform_2, window_bounds = array<i64: 1, 200>}, {pipeline_mode = #tpu.pipeline_mode<synchronous>, transform_indices = @transform_3, window_bounds = array<i64: 200, 80>}, {pipeline_mode = #tpu.pipeline_mode<synchronous>, transform_indices = @transform_4, window_bounds = array<i64: 1, 80>}, {pipeline_mode = #tpu.pipeline_mode<synchronous>, transform_indices = @transform_5, window_bounds = array<i64: 80, 40>}, {pipeline_mode = #tpu.pipeline_mode<synchronous>, transform_indices = @transform_6, window_bounds = array<i64: 1, 40>}, {pipeline_mode = #tpu.pipeline_mode<synchronous>, transform_indices = @transform_7, window_bounds = array<i64: 40, 20>}, {pipeline_mode = #tpu.pipeline_mode<synchronous>, transform_indices = @transform_8, window_bounds = array<i64: 1, 20>}, {pipeline_mode = #tpu.pipeline_mode<synchronous>, transform_indices = @transform_9, window_bounds = array<i64: 20, 128>}, {pipeline_mode = #tpu.pipeline_mode<synchronous>, transform_indices = @transform_10, window_bounds = array<i64: 1, 128>}, {transform_indices = @transform_11, window_bounds = array<i64: 2, 128>}]} {
    %c0 = arith.constant 0 : index
    %c0_0 = arith.constant 0 : index
    %0 = vector.load %arg1[%c0, %c0_0] : memref<2x16xf32, #tpu.memory_space<vmem>>, vector<2x16xf32>
    %c0_1 = arith.constant 0 : index
    %c0_2 = arith.constant 0 : index
    %1 = vector.load %arg2[%c0_1, %c0_2] : memref<16x200xf32, #tpu.memory_space<vmem>>, vector<16x200xf32>
    %cst = arith.constant dense<0.000000e+00> : vector<2x200xf32>
    %2 = tpu.matmul %0, %1, %cst {dimension_numbers = #tpu.dot_dimension_numbers<[1], [0], [0], [1], [0, 0, 1, 1], [], []>} : vector<2x16xf32>, vector<16x200xf32>, vector<2x200xf32> -> vector<2x200xf32>
    %c0_3 = arith.constant 0 : index
    %c0_4 = arith.constant 0 : index
    %3 = vector.load %arg3[%c0_3, %c0_4] : memref<1x200xf32, #tpu.memory_space<vmem>>, vector<1x200xf32>
    %4 = vector.broadcast %3 : vector<1x200xf32> to vector<2x200xf32>
    %5 = arith.addf %2, %4 : vector<2x200xf32>
    %6 = math.tanh %5 : vector<2x200xf32>
    %c0_5 = arith.constant 0 : index
    %c0_6 = arith.constant 0 : index
    %7 = vector.load %arg4[%c0_5, %c0_6] : memref<200x80xf32, #tpu.memory_space<vmem>>, vector<200x80xf32>
    %cst_7 = arith.constant dense<0.000000e+00> : vector<2x80xf32>
    %8 = tpu.matmul %6, %7, %cst_7 {dimension_numbers = #tpu.dot_dimension_numbers<[1], [0], [0], [1], [0, 0, 1, 1], [], []>} : vector<2x200xf32>, vector<200x80xf32>, vector<2x80xf32> -> vector<2x80xf32>
    %c0_8 = arith.constant 0 : index
    %c0_9 = arith.constant 0 : index
    %9 = vector.load %arg5[%c0_8, %c0_9] : memref<1x80xf32, #tpu.memory_space<vmem>>, vector<1x80xf32>
    %10 = vector.broadcast %9 : vector<1x80xf32> to vector<2x80xf32>
    %11 = arith.addf %8, %10 : vector<2x80xf32>
    %12 = math.tanh %11 : vector<2x80xf32>
    %c0_10 = arith.constant 0 : index
    %c0_11 = arith.constant 0 : index
    %13 = vector.load %arg6[%c0_10, %c0_11] : memref<80x40xf32, #tpu.memory_space<vmem>>, vector<80x40xf32>
    %cst_12 = arith.constant dense<0.000000e+00> : vector<2x40xf32>
    %14 = tpu.matmul %12, %13, %cst_12 {dimension_numbers = #tpu.dot_dimension_numbers<[1], [0], [0], [1], [0, 0, 1, 1], [], []>} : vector<2x80xf32>, vector<80x40xf32>, vector<2x40xf32> -> vector<2x40xf32>
    %c0_13 = arith.constant 0 : index
    %c0_14 = arith.constant 0 : index
    %15 = vector.load %arg7[%c0_13, %c0_14] : memref<1x40xf32, #tpu.memory_space<vmem>>, vector<1x40xf32>
    %16 = vector.broadcast %15 : vector<1x40xf32> to vector<2x40xf32>
    %17 = arith.addf %14, %16 : vector<2x40xf32>
    %18 = math.tanh %17 : vector<2x40xf32>
    %c0_15 = arith.constant 0 : index
    %c0_16 = arith.constant 0 : index
    %19 = vector.load %arg8[%c0_15, %c0_16] : memref<40x20xf32, #tpu.memory_space<vmem>>, vector<40x20xf32>
    %cst_17 = arith.constant dense<0.000000e+00> : vector<2x20xf32>
    %20 = tpu.matmul %18, %19, %cst_17 {dimension_numbers = #tpu.dot_dimension_numbers<[1], [0], [0], [1], [0, 0, 1, 1], [], []>} : vector<2x40xf32>, vector<40x20xf32>, vector<2x20xf32> -> vector<2x20xf32>
    %c0_18 = arith.constant 0 : index
    %c0_19 = arith.constant 0 : index
    %21 = vector.load %arg9[%c0_18, %c0_19] : memref<1x20xf32, #tpu.memory_space<vmem>>, vector<1x20xf32>
    %22 = vector.broadcast %21 : vector<1x20xf32> to vector<2x20xf32>
    %23 = arith.addf %20, %22 : vector<2x20xf32>
    %24 = math.tanh %23 : vector<2x20xf32>
    %c0_20 = arith.constant 0 : index
    %c0_21 = arith.constant 0 : index
    %25 = vector.load %arg10[%c0_20, %c0_21] : memref<20x128xf32, #tpu.memory_space<vmem>>, vector<20x128xf32>
    %cst_22 = arith.constant dense<0.000000e+00> : vector<2x128xf32>
    %26 = tpu.matmul %24, %25, %cst_22 {dimension_numbers = #tpu.dot_dimension_numbers<[1], [0], [0], [1], [0, 0, 1, 1], [], []>} : vector<2x20xf32>, vector<20x128xf32>, vector<2x128xf32> -> vector<2x128xf32>
    %c0_23 = arith.constant 0 : index
    %c0_24 = arith.constant 0 : index
    %27 = vector.load %arg11[%c0_23, %c0_24] : memref<1x128xf32, #tpu.memory_space<vmem>>, vector<1x128xf32>
    %28 = vector.broadcast %27 : vector<1x128xf32> to vector<2x128xf32>
    %29 = arith.addf %26, %28 : vector<2x128xf32>
    %30 = math.tanh %29 : vector<2x128xf32>
    %cst_25 = arith.constant 2.000000e+00 : f32
    %31 = vector.broadcast %cst_25 : f32 to vector<2x128xf32>
    %32 = arith.mulf %31, %30 : vector<2x128xf32>
    %c0_26 = arith.constant 0 : index
    %c0_27 = arith.constant 0 : index
    %33 = vector.load %arg12[%c0_26, %c0_27] : memref<2x128xf32, #tpu.memory_space<vmem>>, vector<2x128xf32>
    tpu.vector_store %arg12[%c0_26, %c0_27], %32 {strides = array<i32>} : memref<2x128xf32, #tpu.memory_space<vmem>>, vector<2x128xf32>,
    return
  }
  func.func @transform_0(%arg0: i32) -> (i32, i32) {
    %c0_i32 = arith.constant 0 : i32
    %c0_i32_0 = arith.constant 0 : i32
    return %arg0, %c0_i32 : i32, i32
  }
  func.func @transform_1(%arg0: i32) -> (i32, i32) {
    %c0_i32 = arith.constant 0 : i32
    %c0_i32_0 = arith.constant 0 : i32
    %c0_i32_1 = arith.constant 0 : i32
    return %c0_i32, %c0_i32_0 : i32, i32
  }
  func.func @transform_2(%arg0: i32) -> (i32, i32) {
    %c0_i32 = arith.constant 0 : i32
    %c0_i32_0 = arith.constant 0 : i32
    %c0_i32_1 = arith.constant 0 : i32
    return %c0_i32, %c0_i32_0 : i32, i32
  }
  func.func @transform_3(%arg0: i32) -> (i32, i32) {
    %c0_i32 = arith.constant 0 : i32
    %c0_i32_0 = arith.constant 0 : i32
    %c0_i32_1 = arith.constant 0 : i32
    return %c0_i32, %c0_i32_0 : i32, i32
  }
  func.func @transform_4(%arg0: i32) -> (i32, i32) {
    %c0_i32 = arith.constant 0 : i32
    %c0_i32_0 = arith.constant 0 : i32
    %c0_i32_1 = arith.constant 0 : i32
    return %c0_i32, %c0_i32_0 : i32, i32
  }
  func.func @transform_5(%arg0: i32) -> (i32, i32) {
    %c0_i32 = arith.constant 0 : i32
    %c0_i32_0 = arith.constant 0 : i32
    %c0_i32_1 = arith.constant 0 : i32
    return %c0_i32, %c0_i32_0 : i32, i32
  }
  func.func @transform_6(%arg0: i32) -> (i32, i32) {
    %c0_i32 = arith.constant 0 : i32
    %c0_i32_0 = arith.constant 0 : i32
    %c0_i32_1 = arith.constant 0 : i32
    return %c0_i32, %c0_i32_0 : i32, i32
  }
  func.func @transform_7(%arg0: i32) -> (i32, i32) {
    %c0_i32 = arith.constant 0 : i32
    %c0_i32_0 = arith.constant 0 : i32
    %c0_i32_1 = arith.constant 0 : i32
    return %c0_i32, %c0_i32_0 : i32, i32
  }
  func.func @transform_8(%arg0: i32) -> (i32, i32) {
    %c0_i32 = arith.constant 0 : i32
    %c0_i32_0 = arith.constant 0 : i32
    %c0_i32_1 = arith.constant 0 : i32
    return %c0_i32, %c0_i32_0 : i32, i32
  }
  func.func @transform_9(%arg0: i32) -> (i32, i32) {
    %c0_i32 = arith.constant 0 : i32
    %c0_i32_0 = arith.constant 0 : i32
    %c0_i32_1 = arith.constant 0 : i32
    return %c0_i32, %c0_i32_0 : i32, i32
  }
  func.func @transform_10(%arg0: i32) -> (i32, i32) {
    %c0_i32 = arith.constant 0 : i32
    %c0_i32_0 = arith.constant 0 : i32
    %c0_i32_1 = arith.constant 0 : i32
    return %c0_i32, %c0_i32_0 : i32, i32
  }
  func.func @transform_11(%arg0: i32) -> (i32, i32) {
    %c0_i32 = arith.constant 0 : i32
    %c0_i32_0 = arith.constant 0 : i32
    return %arg0, %c0_i32 : i32, i32
  }
}

</mosaic_0001>

<llo_original>
// kernel: tpu_custom_call.1
$region0: #{tpu_custom_call.1}
  #allocation0 [shape = 'u32[]', space=smem, size = 0x4, offset = 0x4, fixed_abs, tag = 'smem constant byte address 0x4 - core index']
  #allocation1 [shape = 'u32[144,128]{1,0:T(1,128)}', space=vmem, size = 0x12000, scoped, tag = 'internal scratch']
  %s0 = inlined_call_operand.vmem [shape: f32[2,16], index: 0, kind: input, shape index: {}]
  %s1 = inlined_call_operand.vmem [shape: f32[16,200], index: 1, kind: input, shape index: {}]
  %s2 = inlined_call_operand.vmem [shape: f32[1,200], index: 2, kind: input, shape index: {}]
  %s3 = inlined_call_operand.vmem [shape: f32[200,80], index: 3, kind: input, shape index: {}]
  %s4 = inlined_call_operand.vmem [shape: f32[1,80], index: 4, kind: input, shape index: {}]
  %s5 = inlined_call_operand.vmem [shape: f32[80,40], index: 5, kind: input, shape index: {}]
  %s6 = inlined_call_operand.vmem [shape: f32[1,40], index: 6, kind: input, shape index: {}]
  %s7 = inlined_call_operand.vmem [shape: f32[40,20], index: 7, kind: input, shape index: {}]
  %s8 = inlined_call_operand.vmem [shape: f32[1,20], index: 8, kind: input, shape index: {}]
  %s9 = inlined_call_operand.vmem [shape: f32[20,128], index: 9, kind: input, shape index: {}]
  %s10 = inlined_call_operand.vmem [shape: f32[1,128], index: 10, kind: input, shape index: {}]
  %s11 = inlined_call_operand.hbm [shape: f32[2,128], index: 11, kind: output, shape index: {}]
  %s12 = sld [smem:[#allocation0]]
  $region54: #{tpu_custom_call.1} parent=0
    _
  %s14 = ssub.s32 1, %s12
  %s15 = scalar_select 0, %s14, %s12
  $region1: #{tpu_custom_call.1} parent=0
    #allocation2 [shape = 'u8[1024]{0}', space=vmem, size = 0x400, scoped, tag = 'output window, operand 0, single buffered']
    #allocation3 [shape = 's32[1]{0}', space=sflag, size = 0x4, scoped, tag = 'scoped memory for tpu_custom_call.1']
    %16 = vsyncpa [#allocation3], 0
    // Predicated region
    $region2: #{tpu_custom_call.1} parent=1 // pred_check
      _
    $region3: #{tpu_custom_call.1} parent=1 // pred_check_branch
      %18 = sbr.rel (0) target = $region5
    $region4: #{tpu_custom_call.1} parent=1 // pred_region
      _
    $region5: #{tpu_custom_call.1} parent=1 // pred_fallthru
      _
    // Predicated region
    $region6: #{tpu_custom_call.1} parent=1 // pred_check
      _
    $region7: #{tpu_custom_call.1} parent=1 // pred_check_branch
      %20 = sbr.rel (0) target = $region9
    $region8: #{tpu_custom_call.1} parent=1 // pred_region
      _
    $region9: #{tpu_custom_call.1} parent=1 // pred_fallthru
      _
    // Predicated region
    $region10: #{tpu_custom_call.1} parent=1 // pred_check
      _
    $region11: #{tpu_custom_call.1} parent=1 // pred_check_branch
      %22 = sbr.rel (0) target = $region13
    $region12: #{tpu_custom_call.1} parent=1 // pred_region
      _
    $region13: #{tpu_custom_call.1} parent=1 // pred_fallthru
      _
    // Predicated region
    $region14: #{tpu_custom_call.1} parent=1 // pred_check
      _
    $region15: #{tpu_custom_call.1} parent=1 // pred_check_branch
      %24 = sbr.rel (0) target = $region17
    $region16: #{tpu_custom_call.1} parent=1 // pred_region
      _
    $region17: #{tpu_custom_call.1} parent=1 // pred_fallthru
      _
    // Predicated region
    $region18: #{tpu_custom_call.1} parent=1 // pred_check
      _
    $region19: #{tpu_custom_call.1} parent=1 // pred_check_branch
      %26 = sbr.rel (0) target = $region21
    $region20: #{tpu_custom_call.1} parent=1 // pred_region
      _
    $region21: #{tpu_custom_call.1} parent=1 // pred_fallthru
      _
    // Predicated region
    $region22: #{tpu_custom_call.1} parent=1 // pred_check
      _
    $region23: #{tpu_custom_call.1} parent=1 // pred_check_branch
      %28 = sbr.rel (0) target = $region25
    $region24: #{tpu_custom_call.1} parent=1 // pred_region
      _
    $region25: #{tpu_custom_call.1} parent=1 // pred_fallthru
      _
    // Predicated region
    $region26: #{tpu_custom_call.1} parent=1 // pred_check
      _
    $region27: #{tpu_custom_call.1} parent=1 // pred_check_branch
      %30 = sbr.rel (0) target = $region29
    $region28: #{tpu_custom_call.1} parent=1 // pred_region
      _
    $region29: #{tpu_custom_call.1} parent=1 // pred_fallthru
      _
    // Predicated region
    $region30: #{tpu_custom_call.1} parent=1 // pred_check
      _
    $region31: #{tpu_custom_call.1} parent=1 // pred_check_branch
      %32 = sbr.rel (0) target = $region33
    $region32: #{tpu_custom_call.1} parent=1 // pred_region
      _
    $region33: #{tpu_custom_call.1} parent=1 // pred_fallthru
      _
    // Predicated region
    $region34: #{tpu_custom_call.1} parent=1 // pred_check
      _
    $region35: #{tpu_custom_call.1} parent=1 // pred_check_branch
      %34 = sbr.rel (0) target = $region37
    $region36: #{tpu_custom_call.1} parent=1 // pred_region
      _
    $region37: #{tpu_custom_call.1} parent=1 // pred_fallthru
      _
    // Predicated region
    $region38: #{tpu_custom_call.1} parent=1 // pred_check
      _
    $region39: #{tpu_custom_call.1} parent=1 // pred_check_branch
      %36 = sbr.rel (0) target = $region41
    $region40: #{tpu_custom_call.1} parent=1 // pred_region
      _
    $region41: #{tpu_custom_call.1} parent=1 // pred_fallthru
      _
    // Predicated region
    $region42: #{tpu_custom_call.1} parent=1 // pred_check
      _
    $region43: #{tpu_custom_call.1} parent=1 // pred_check_branch
      %38 = sbr.rel (0) target = $region45
    $region44: #{tpu_custom_call.1} parent=1 // pred_region
      _
    $region45: #{tpu_custom_call.1} parent=1 // pred_fallthru
      _
    %v39 = vld [vmem:[%s0] sm:$0x3]
    %v40 = vld [vmem:[%s1] sm:$0xff]
    %v41 = vld [vmem:[%s1 + $0x8] sm:$0xff]
    %v42 = vld [vmem:[%s1 + $0x10] sm:$0xff]
    %v43 = vld [vmem:[%s1 + $0x18] sm:$0xff]
    %v44 = vld [vmem:[%s2] sm:$0x3]
    %v46 = vlaneseq
    %v47 = vshrl.u32 %v46, 7
    %v48 = vsub.s32 0, %v47
    %v49 = vrot.slane %v44, %v48
    %v50 = vlaneseq
    %v51 = vshrl.u32 %v50, 7
    %v52 = vsub.s32 1, %v51
    %v53 = vrot.slane %v44, %v52
    %vm56 = vcmask 130048
    %v58 = vsel %vm56, %v39, 0
    %60 = vmatprep.subr.mxu0 %v41
    %61 = vmatpush1.msra.mxu0 %v40
    %62 = vmatprep.subr.mxu0 %v43
    %63 = vmatpush1.msra.mxu0 %v42
    %64 = vmatprep.subr.mxu0 0.0
    %65 = vmatpush1.msra.mxu0 0.0
    %66 = vmatprep.subr.mxu0 0.0
    %67 = vmatpush1.msra.mxu0 0.0
    %68 = vmatprep.subr.mxu0 0.0
    %69 = vmatpush1.msra.mxu0 0.0
    %70 = vmatprep.subr.mxu0 0.0
    %71 = vmatpush1.msra.mxu0 0.0
    %72 = vmatprep.subr.mxu0 0.0
    %73 = vmatpush1.msra.mxu0 0.0
    %74 = vmatprep.subr.mxu0 0.0
    %75 = vmatpush1.msra.mxu0 0.0
    %76 = vmatprep.subr.mxu0 0.0
    %77 = vmatpush1.msra.mxu0 0.0
    %78 = vmatprep.subr.mxu0 0.0
    %79 = vmatpush1.msra.mxu0 0.0
    %80 = vmatprep.subr.mxu0 0.0
    %81 = vmatpush1.msra.mxu0 0.0
    %82 = vmatprep.subr.mxu0 0.0
    %83 = vmatpush1.msra.mxu0 0.0
    %84 = vmatprep.subr.mxu0 0.0
    %85 = vmatpush1.msra.mxu0 0.0
    %86 = vmatprep.subr.mxu0 0.0
    %87 = vmatpush1.msra.mxu0 0.0
    %88 = vmatprep.subr.mxu0 0.0
    %89 = vmatpush1.msra.mxu0 0.0
    %90 = vmatprep.subr.mxu0 0.0
    %91 = vmatpush1.msra.mxu0 0.0
    %92 = vmatprep.subr.mxu0 0.0
    %93 = vmatpush1.msra.mxu0 0.0
    %94 = vmatprep.subr.mxu0 0.0
    %95 = vmatpush1.msra.mxu0 0.0
    %96 = vmatprep.subr.mxu0 0.0
    %97 = vmatpush1.msra.mxu0 0.0
    %98 = vmatprep.subr.mxu0 0.0
    %99 = vmatpush1.msra.mxu0 0.0
    %100 = vmatprep.subr.mxu0 0.0
    %101 = vmatpush1.msra.mxu0 0.0
    %102 = vmatprep.subr.mxu0 0.0
    %103 = vmatpush1.msra.mxu0 0.0
    %104 = vmatprep.subr.mxu0 0.0
    %105 = vmatpush1.msra.mxu0 0.0
    %106 = vmatprep.subr.mxu0 0.0
    %107 = vmatpush1.msra.mxu0 0.0
    %108 = vmatprep.subr.mxu0 0.0
    %109 = vmatpush1.msra.mxu0 0.0
    %110 = vmatprep.subr.mxu0 0.0
    %111 = vmatpush1.msra.mxu0 0.0
    %112 = vmatprep.subr.mxu0 0.0
    %113 = vmatpush1.msra.mxu0 0.0
    %114 = vmatprep.subr.mxu0 0.0
    %115 = vmatpush1.msra.mxu0 0.0
    %116 = vmatprep.subr.mxu0 0.0
    %117 = vmatpush1.msra.mxu0 0.0
    %118 = vmatprep.subr.mxu0 0.0
    %119 = vmatpush1.msra.mxu0 0.0
    %120 = vmatprep.subr.mxu0 0.0
    %121 = vmatpush1.msra.mxu0 0.0
    %122 = vmatprep.subr.mxu0 0.0
    %123 = vmatpush1.msra.mxu0 0.0
    %124 = vmatprep.mubr.f32.mxu0 0.0
    %125 = vmatmul.mubr.f32.gmra.mrb[0].mxu0 %v58
    %v126 = vpop.f32.mrb[0].mxu0
    %v127 = vadd.f32 %v49, %v126
    %v128 = vpop.f32.mrb[0].mxu0
    %v129 = vadd.f32 %v53, %v128
    %130 = vdwg.mxu0
    %v131 = vtanh.pop %v127
    %v132 = vtanh.pop %v129
    %v133 = vld [vmem:[%s3] sm:$0xff]
    %v134 = vld [vmem:[%s3 + $0x8] sm:$0xff]
    %v135 = vld [vmem:[%s3 + $0x10] sm:$0xff]
    %v136 = vld [vmem:[%s3 + $0x18] sm:$0xff]
    %v137 = vld [vmem:[%s3 + $0x20] sm:$0xff]
    %v138 = vld [vmem:[%s3 + $0x28] sm:$0xff]
    %v139 = vld [vmem:[%s3 + $0x30] sm:$0xff]
    %v140 = vld [vmem:[%s3 + $0x38] sm:$0xff]
    %v141 = vld [vmem:[%s3 + $0x40] sm:$0xff]
    %v142 = vld [vmem:[%s3 + $0x48] sm:$0xff]
    %v143 = vld [vmem:[%s3 + $0x50] sm:$0xff]
    %v144 = vld [vmem:[%s3 + $0x58] sm:$0xff]
    %v145 = vld [vmem:[%s3 + $0x60] sm:$0xff]
    %v146 = vld [vmem:[%s3 + $0x68] sm:$0xff]
    %v147 = vld [vmem:[%s3 + $0x70] sm:$0xff]
    %v148 = vld [vmem:[%s3 + $0x78] sm:$0xff]
    %v149 = vld [vmem:[%s3 + $0x80] sm:$0xff]
    %v150 = vld [vmem:[%s3 + $0x88] sm:$0xff]
    %v151 = vld [vmem:[%s3 + $0x90] sm:$0xff]
    %v152 = vld [vmem:[%s3 + $0x98] sm:$0xff]
    %v153 = vld [vmem:[%s3 + $0xa0] sm:$0xff]
    %v154 = vld [vmem:[%s3 + $0xa8] sm:$0xff]
    %v155 = vld [vmem:[%s3 + $0xb0] sm:$0xff]
    %v156 = vld [vmem:[%s3 + $0xb8] sm:$0xff]
    %v157 = vld [vmem:[%s3 + $0xc0] sm:$0xff]
    %v158 = vld [vmem:[%s4] sm:$0x1]
    %v160 = vlaneseq
    %v161 = vshrl.u32 %v160, 7
    %v162 = vsub.s32 0, %v161
    %v163 = vrot.slane %v158, %v162
    %vm165 = vcmask 588800
    %v167 = vsel %vm165, %v132, 0
    %169 = vmatprep.subr.mxu0 0.0
    %170 = vmatpush1.msra.mxu0 %v133
    %171 = vmatprep.subr.mxu0 0.0
    %172 = vmatpush1.msra.mxu0 %v134
    %173 = vmatprep.subr.mxu0 0.0
    %174 = vmatpush1.msra.mxu0 %v135
    %175 = vmatprep.subr.mxu0 0.0
    %176 = vmatpush1.msra.mxu0 %v136
    %177 = vmatprep.subr.mxu0 0.0
    %178 = vmatpush1.msra.mxu0 %v137
    %179 = vmatprep.subr.mxu0 0.0
    %180 = vmatpush1.msra.mxu0 %v138
    %181 = vmatprep.subr.mxu0 0.0
    %182 = vmatpush1.msra.mxu0 %v139
    %183 = vmatprep.subr.mxu0 0.0
    %184 = vmatpush1.msra.mxu0 %v140
    %185 = vmatprep.subr.mxu0 0.0
    %186 = vmatpush1.msra.mxu0 %v141
    %187 = vmatprep.subr.mxu0 0.0
    %188 = vmatpush1.msra.mxu0 %v142
    %189 = vmatprep.subr.mxu0 0.0
    %190 = vmatpush1.msra.mxu0 %v143
    %191 = vmatprep.subr.mxu0 0.0
    %192 = vmatpush1.msra.mxu0 %v144
    %193 = vmatprep.subr.mxu0 0.0
    %194 = vmatpush1.msra.mxu0 %v145
    %195 = vmatprep.subr.mxu0 0.0
    %196 = vmatpush1.msra.mxu0 %v146
    %197 = vmatprep.subr.mxu0 0.0
    %198 = vmatpush1.msra.mxu0 %v147
    %199 = vmatprep.subr.mxu0 0.0
    %200 = vmatpush1.msra.mxu0 %v148
    %201 = vmatprep.subr.mxu0 0.0
    %202 = vmatpush1.msra.mxu0 %v149
    %203 = vmatprep.subr.mxu0 0.0
    %204 = vmatpush1.msra.mxu0 %v150
    %205 = vmatprep.subr.mxu0 0.0
    %206 = vmatpush1.msra.mxu0 %v151
    %207 = vmatprep.subr.mxu0 0.0
    %208 = vmatpush1.msra.mxu0 %v152
    %209 = vmatprep.subr.mxu0 0.0
    %210 = vmatpush1.msra.mxu0 %v153
    %211 = vmatprep.subr.mxu0 0.0
    %212 = vmatpush1.msra.mxu0 %v154
    %213 = vmatprep.subr.mxu0 0.0
    %214 = vmatpush1.msra.mxu0 %v155
    %215 = vmatprep.subr.mxu0 0.0
    %216 = vmatpush1.msra.mxu0 %v156
    %217 = vmatprep.subr.mxu0 0.0
    %218 = vmatpush1.msra.mxu0 %v157
    %219 = vmatprep.subr.mxu0 0.0
    %220 = vmatpush1.msra.mxu0 0.0
    %221 = vmatprep.subr.mxu0 0.0
    %222 = vmatpush1.msra.mxu0 0.0
    %223 = vmatprep.subr.mxu0 0.0
    %224 = vmatpush1.msra.mxu0 0.0
    %225 = vmatprep.subr.mxu0 0.0
    %226 = vmatpush1.msra.mxu0 0.0
    %227 = vmatprep.subr.mxu0 0.0
    %228 = vmatpush1.msra.mxu0 0.0
    %229 = vmatprep.subr.mxu0 0.0
    %230 = vmatpush1.msra.mxu0 0.0
    %231 = vmatprep.subr.mxu0 0.0
    %232 = vmatpush1.msra.mxu0 0.0
    %233 = vmatprep.mubr.f32.mxu0 %v167
    %234 = vmatmul.mubr.f32.gmra.mrb[0].mxu0 %v131
    %v235 = vpop.f32.mrb[0].mxu0
    %v236 = vadd.f32 %v163, %v235
    %v237 = vpop.f32.mrb[0].mxu0
    %238 = vdwg.mxu0
    %v239 = vtanh.pop %v236
    %v240 = vld [vmem:[%s5] sm:$0xff]
    %v241 = vld [vmem:[%s5 + $0x8] sm:$0xff]
    %v242 = vld [vmem:[%s5 + $0x10] sm:$0xff]
    %v243 = vld [vmem:[%s5 + $0x18] sm:$0xff]
    %v244 = vld [vmem:[%s5 + $0x20] sm:$0xff]
    %v245 = vld [vmem:[%s5 + $0x28] sm:$0xff]
    %v246 = vld [vmem:[%s5 + $0x30] sm:$0xff]
    %v247 = vld [vmem:[%s5 + $0x38] sm:$0xff]
    %v248 = vld [vmem:[%s5 + $0x40] sm:$0xff]
    %v249 = vld [vmem:[%s5 + $0x48] sm:$0xff]
    %v250 = vld [vmem:[%s6] sm:$0x1]
    %v252 = vlaneseq
    %v253 = vshrl.u32 %v252, 7
    %v254 = vsub.s32 0, %v253
    %v255 = vrot.slane %v250, %v254
    %vm257 = vcmask 654336
    %v259 = vsel %vm257, %v239, 0
    %261 = vmatprep.subr.mxu0 0.0
    %262 = vmatpush1.msra.mxu0 %v240
    %263 = vmatprep.subr.mxu0 0.0
    %264 = vmatpush1.msra.mxu0 %v241
    %265 = vmatprep.subr.mxu0 0.0
    %266 = vmatpush1.msra.mxu0 %v242
    %267 = vmatprep.subr.mxu0 0.0
    %268 = vmatpush1.msra.mxu0 %v243
    %269 = vmatprep.subr.mxu0 0.0
    %270 = vmatpush1.msra.mxu0 %v244
    %271 = vmatprep.subr.mxu0 0.0
    %272 = vmatpush1.msra.mxu0 %v245
    %273 = vmatprep.subr.mxu0 0.0
    %274 = vmatpush1.msra.mxu0 %v246
    %275 = vmatprep.subr.mxu0 0.0
    %276 = vmatpush1.msra.mxu0 %v247
    %277 = vmatprep.subr.mxu0 0.0
    %278 = vmatpush1.msra.mxu0 %v248
    %279 = vmatprep.subr.mxu0 0.0
    %280 = vmatpush1.msra.mxu0 %v249
    %281 = vmatprep.subr.mxu0 0.0
    %282 = vmatpush1.msra.mxu0 0.0
    %283 = vmatprep.subr.mxu0 0.0
    %284 = vmatpush1.msra.mxu0 0.0
    %285 = vmatprep.subr.mxu0 0.0
    %286 = vmatpush1.msra.mxu0 0.0
    %287 = vmatprep.subr.mxu0 0.0
    %288 = vmatpush1.msra.mxu0 0.0
    %289 = vmatprep.subr.mxu0 0.0
    %290 = vmatpush1.msra.mxu0 0.0
    %291 = vmatprep.subr.mxu0 0.0
    %292 = vmatpush1.msra.mxu0 0.0
    %293 = vmatprep.subr.mxu0 0.0
    %294 = vmatpush1.msra.mxu0 0.0
    %295 = vmatprep.subr.mxu0 0.0
    %296 = vmatpush1.msra.mxu0 0.0
    %297 = vmatprep.subr.mxu0 0.0
    %298 = vmatpush1.msra.mxu0 0.0
    %299 = vmatprep.subr.mxu0 0.0
    %300 = vmatpush1.msra.mxu0 0.0
    %301 = vmatprep.subr.mxu0 0.0
    %302 = vmatpush1.msra.mxu0 0.0
    %303 = vmatprep.subr.mxu0 0.0
    %304 = vmatpush1.msra.mxu0 0.0
    %305 = vmatprep.subr.mxu0 0.0
    %306 = vmatpush1.msra.mxu0 0.0
    %307 = vmatprep.subr.mxu0 0.0
    %308 = vmatpush1.msra.mxu0 0.0
    %309 = vmatprep.subr.mxu0 0.0
    %310 = vmatpush1.msra.mxu0 0.0
    %311 = vmatprep.subr.mxu0 0.0
    %312 = vmatpush1.msra.mxu0 0.0
    %313 = vmatprep.subr.mxu0 0.0
    %314 = vmatpush1.msra.mxu0 0.0
    %315 = vmatprep.subr.mxu0 0.0
    %316 = vmatpush1.msra.mxu0 0.0
    %317 = vmatprep.subr.mxu0 0.0
    %318 = vmatpush1.msra.mxu0 0.0
    %319 = vmatprep.subr.mxu0 0.0
    %320 = vmatpush1.msra.mxu0 0.0
    %321 = vmatprep.subr.mxu0 0.0
    %322 = vmatpush1.msra.mxu0 0.0
    %323 = vmatprep.subr.mxu0 0.0
    %324 = vmatpush1.msra.mxu0 0.0
    %325 = vmatprep.mubr.f32.mxu0 0.0
    %326 = vmatmul.mubr.f32.gmra.mrb[0].mxu0 %v259
    %v327 = vpop.f32.mrb[0].mxu0
    %v328 = vadd.f32 %v255, %v327
    %v329 = vpop.f32.mrb[0].mxu0
    %330 = vdwg.mxu0
    %v331 = vtanh.pop %v328
    %v332 = vld [vmem:[%s7] sm:$0xff]
    %v333 = vld [vmem:[%s7 + $0x8] sm:$0xff]
    %v334 = vld [vmem:[%s7 + $0x10] sm:$0xff]
    %v335 = vld [vmem:[%s7 + $0x18] sm:$0xff]
    %v336 = vld [vmem:[%s7 + $0x20] sm:$0xff]
    %v337 = vld [vmem:[%s8] sm:$0x1]
    %v339 = vlaneseq
    %v340 = vshrl.u32 %v339, 7
    %v341 = vsub.s32 0, %v340
    %v342 = vrot.slane %v337, %v341
    %vm344 = vcmask 326656
    %v346 = vsel %vm344, %v331, 0
    %348 = vmatprep.subr.mxu0 0.0
    %349 = vmatpush1.msra.mxu0 %v332
    %350 = vmatprep.subr.mxu0 0.0
    %351 = vmatpush1.msra.mxu0 %v333
    %352 = vmatprep.subr.mxu0 0.0
    %353 = vmatpush1.msra.mxu0 %v334
    %354 = vmatprep.subr.mxu0 0.0
    %355 = vmatpush1.msra.mxu0 %v335
    %356 = vmatprep.subr.mxu0 0.0
    %357 = vmatpush1.msra.mxu0 %v336
    %358 = vmatprep.subr.mxu0 0.0
    %359 = vmatpush1.msra.mxu0 0.0
    %360 = vmatprep.subr.mxu0 0.0
    %361 = vmatpush1.msra.mxu0 0.0
    %362 = vmatprep.subr.mxu0 0.0
    %363 = vmatpush1.msra.mxu0 0.0
    %364 = vmatprep.subr.mxu0 0.0
    %365 = vmatpush1.msra.mxu0 0.0
    %366 = vmatprep.subr.mxu0 0.0
    %367 = vmatpush1.msra.mxu0 0.0
    %368 = vmatprep.subr.mxu0 0.0
    %369 = vmatpush1.msra.mxu0 0.0
    %370 = vmatprep.subr.mxu0 0.0
    %371 = vmatpush1.msra.mxu0 0.0
    %372 = vmatprep.subr.mxu0 0.0
    %373 = vmatpush1.msra.mxu0 0.0
    %374 = vmatprep.subr.mxu0 0.0
    %375 = vmatpush1.msra.mxu0 0.0
    %376 = vmatprep.subr.mxu0 0.0
    %377 = vmatpush1.msra.mxu0 0.0
    %378 = vmatprep.subr.mxu0 0.0
    %379 = vmatpush1.msra.mxu0 0.0
    %380 = vmatprep.subr.mxu0 0.0
    %381 = vmatpush1.msra.mxu0 0.0
    %382 = vmatprep.subr.mxu0 0.0
    %383 = vmatpush1.msra.mxu0 0.0
    %384 = vmatprep.subr.mxu0 0.0
    %385 = vmatpush1.msra.mxu0 0.0
    %386 = vmatprep.subr.mxu0 0.0
    %387 = vmatpush1.msra.mxu0 0.0
    %388 = vmatprep.subr.mxu0 0.0
    %389 = vmatpush1.msra.mxu0 0.0
    %390 = vmatprep.subr.mxu0 0.0
    %391 = vmatpush1.msra.mxu0 0.0
    %392 = vmatprep.subr.mxu0 0.0
    %393 = vmatpush1.msra.mxu0 0.0
    %394 = vmatprep.subr.mxu0 0.0
    %395 = vmatpush1.msra.mxu0 0.0
    %396 = vmatprep.subr.mxu0 0.0
    %397 = vmatpush1.msra.mxu0 0.0
    %398 = vmatprep.subr.mxu0 0.0
    %399 = vmatpush1.msra.mxu0 0.0
    %400 = vmatprep.subr.mxu0 0.0
    %401 = vmatpush1.msra.mxu0 0.0
    %402 = vmatprep.subr.mxu0 0.0
    %403 = vmatpush1.msra.mxu0 0.0
    %404 = vmatprep.subr.mxu0 0.0
    %405 = vmatpush1.msra.mxu0 0.0
    %406 = vmatprep.subr.mxu0 0.0
    %407 = vmatpush1.msra.mxu0 0.0
    %408 = vmatprep.subr.mxu0 0.0
    %409 = vmatpush1.msra.mxu0 0.0
    %410 = vmatprep.subr.mxu0 0.0
    %411 = vmatpush1.msra.mxu0 0.0
    %412 = vmatprep.mubr.f32.mxu0 0.0
    %413 = vmatmul.mubr.f32.gmra.mrb[0].mxu0 %v346
    %v414 = vpop.f32.mrb[0].mxu0
    %v415 = vadd.f32 %v342, %v414
    %v416 = vpop.f32.mrb[0].mxu0
    %417 = vdwg.mxu0
    %v418 = vtanh.pop %v415
    %v419 = vld [vmem:[%s9] sm:$0xff]
    %v420 = vld [vmem:[%s9 + $0x8] sm:$0xff]
    %v421 = vld [vmem:[%s9 + $0x10] sm:$0xf]
    %v422 = vld [vmem:[%s10] sm:$0x1]
    %v424 = vlaneseq
    %v425 = vshrl.u32 %v424, 7
    %v426 = vsub.s32 0, %v425
    %v427 = vrot.slane %v422, %v426
    %vm429 = vcmask 162816
    %v431 = vsel %vm429, %v418, 0
    %vm433 = vcmask 1043456
    %v435 = vsel %vm433, %v421, 0
    %437 = vmatprep.subr.mxu0 0.0
    %438 = vmatpush1.msra.mxu0 %v419
    %439 = vmatprep.subr.mxu0 0.0
    %440 = vmatpush1.msra.mxu0 %v420
    %441 = vmatprep.subr.mxu0 0.0
    %442 = vmatpush1.msra.mxu0 %v435
    %443 = vmatprep.subr.mxu0 0.0
    %444 = vmatpush1.msra.mxu0 0.0
    %445 = vmatprep.subr.mxu0 0.0
    %446 = vmatpush1.msra.mxu0 0.0
    %447 = vmatprep.subr.mxu0 0.0
    %448 = vmatpush1.msra.mxu0 0.0
    %449 = vmatprep.subr.mxu0 0.0
    %450 = vmatpush1.msra.mxu0 0.0
    %451 = vmatprep.subr.mxu0 0.0
    %452 = vmatpush1.msra.mxu0 0.0
    %453 = vmatprep.subr.mxu0 0.0
    %454 = vmatpush1.msra.mxu0 0.0
    %455 = vmatprep.subr.mxu0 0.0
    %456 = vmatpush1.msra.mxu0 0.0
    %457 = vmatprep.subr.mxu0 0.0
    %458 = vmatpush1.msra.mxu0 0.0
    %459 = vmatprep.subr.mxu0 0.0
    %460 = vmatpush1.msra.mxu0 0.0
    %461 = vmatprep.subr.mxu0 0.0
    %462 = vmatpush1.msra.mxu0 0.0
    %463 = vmatprep.subr.mxu0 0.0
    %464 = vmatpush1.msra.mxu0 0.0
    %465 = vmatprep.subr.mxu0 0.0
    %466 = vmatpush1.msra.mxu0 0.0
    %467 = vmatprep.subr.mxu0 0.0
    %468 = vmatpush1.msra.mxu0 0.0
    %469 = vmatprep.subr.mxu0 0.0
    %470 = vmatpush1.msra.mxu0 0.0
    %471 = vmatprep.subr.mxu0 0.0
    %472 = vmatpush1.msra.mxu0 0.0
    %473 = vmatprep.subr.mxu0 0.0
    %474 = vmatpush1.msra.mxu0 0.0
    %475 = vmatprep.subr.mxu0 0.0
    %476 = vmatpush1.msra.mxu0 0.0
    %477 = vmatprep.subr.mxu0 0.0
    %478 = vmatpush1.msra.mxu0 0.0
    %479 = vmatprep.subr.mxu0 0.0
    %480 = vmatpush1.msra.mxu0 0.0
    %481 = vmatprep.subr.mxu0 0.0
    %482 = vmatpush1.msra.mxu0 0.0
    %483 = vmatprep.subr.mxu0 0.0
    %484 = vmatpush1.msra.mxu0 0.0
    %485 = vmatprep.subr.mxu0 0.0
    %486 = vmatpush1.msra.mxu0 0.0
    %487 = vmatprep.subr.mxu0 0.0
    %488 = vmatpush1.msra.mxu0 0.0
    %489 = vmatprep.subr.mxu0 0.0
    %490 = vmatpush1.msra.mxu0 0.0
    %491 = vmatprep.subr.mxu0 0.0
    %492 = vmatpush1.msra.mxu0 0.0
    %493 = vmatprep.subr.mxu0 0.0
    %494 = vmatpush1.msra.mxu0 0.0
    %495 = vmatprep.subr.mxu0 0.0
    %496 = vmatpush1.msra.mxu0 0.0
    %497 = vmatprep.subr.mxu0 0.0
    %498 = vmatpush1.msra.mxu0 0.0
    %499 = vmatprep.subr.mxu0 0.0
    %500 = vmatpush1.msra.mxu0 0.0
    %501 = vmatprep.mubr.f32.mxu0 0.0
    %502 = vmatmul.mubr.f32.gmra.mrb[0].mxu0 %v431
    %v503 = vpop.f32.mrb[0].mxu0
    %v504 = vadd.f32 %v427, %v503
    %v505 = vpop.f32.mrb[0].mxu0
    %506 = vdwg.mxu0
    %v507 = vtanh.pop %v504
    %v508 = vmul.f32 %v507, 2.0
    %509 = vst [vmem:[#allocation2] sm:$0x3] %v508
    // Predicated region
    $region46: #{tpu_custom_call.1} parent=1 // pred_check
      _
    $region47: #{tpu_custom_call.1} parent=1 // pred_check_branch
      %511 = sbr.rel (0) target = $region49
    $region48: #{tpu_custom_call.1} parent=1 // pred_region
      %s513 = ssub.s32 32, 32
      %514 = vsyncadd [#allocation3], %s513
      %s516 = sshll.u32 [#allocation2], 4
      %s517 = int_to_ptr.vmem [resolvable:$true] %s516
      %519 = dma.vmem_to_hbm [thread:$0]  %s517, 32, %s11, [#allocation3]
    $region49: #{tpu_custom_call.1} parent=1 // pred_fallthru
      _
    // Predicated region
    $region50: #{tpu_custom_call.1} parent=1 // pred_check
      _
    $region51: #{tpu_custom_call.1} parent=1 // pred_check_branch
      %521 = sbr.rel (0) target = $region53
    $region52: #{tpu_custom_call.1} parent=1 // pred_region
      %522 = dma.done [#allocation3], 32
    $region53: #{tpu_custom_call.1} parent=1 // pred_fallthru
      _
    %523 = vsyncpa [#allocation3], 1

</llo_original>
